<compile_context>
chip_gen: v7x
topology: tpu7x:2x2x1
jax: 0.10.0
libtpu: 0.0.40
codegen_flags: <defaults>
</compile_context>

<pallas_src>
import jax
import jax.numpy as jnp
from jax.experimental import pallas as pl
from jax.experimental.pallas import tpu as pltpu


_MXU_MIN_K = 16  # below this contraction depth the 1x1 conv runs on the VPU, not the MXU


def _linear_interp_matrix(out_size, in_size, dtype=jnp.float32):
    """1-D linear interpolation matrix, align_corners=True.  Shape (out_size, in_size)."""
    if out_size == 1:
        src = jnp.zeros((1,), jnp.float32)
    else:
        src = jnp.arange(out_size, dtype=jnp.float32) * ((in_size - 1) / (out_size - 1))
    lo = jnp.clip(jnp.floor(src).astype(jnp.int32), 0, in_size - 1)
    hi = jnp.clip(lo + 1, 0, in_size - 1)
    frac = src - lo.astype(jnp.float32)
    rows = jnp.arange(out_size)
    m = jnp.zeros((out_size, in_size), jnp.float32)
    m = m.at[rows, lo].add(1.0 - frac)
    m = m.at[rows, hi].add(frac)
    return m.astype(dtype)


def _resize_operator(hin, win, hout, wout, bt, dtype):
    """Block-diagonal I_bt (x) (ry (x) rx)^T, shape (bt*hin*win, bt*hout*wout).

    Columns of the feature map are flattened as (b_local, h, w); right-multiplying by this
    operator performs the full bilinear align_corners resize for every batch element in
    the tile with a single matmul.
    """
    ry = _linear_interp_matrix(hout, hin)                       # (hout, hin)
    rx = _linear_interp_matrix(wout, win)                       # (wout, win)
    r = jnp.einsum("oh,pw->hwop", ry, rx).reshape(hin * win, hout * wout)
    eye = jnp.eye(bt, dtype=jnp.float32)
    big = jnp.einsum("ab,ij->aibj", eye, r).reshape(bt * hin * win, bt * hout * wout)
    return big.astype(dtype)


def _pick_batch_tile(batch, sin, sout):
    """Smallest batch tile with 128-aligned, lane-dense blocks; prefer grid >= 2.

    grid >= 2 lets dimension_semantics=("parallel",) shard across the two TensorCores on
    v7x.  Lane density (>=128-wide, 128-aligned stores) wins when the two conflict.
    """
    candidates = []
    for bt in range(1, batch + 1):
        if batch % bt:
            continue
        if bt == batch:
            candidates.append(bt)                      # full-array block: always legal
        elif (bt * sout) % 128 == 0 and (bt * sin) % 128 == 0:
            candidates.append(bt)
    for bt in candidates:                              # ascending -> maximizes grid size
        if batch // bt >= 2:
            return bt
    return candidates[0]


def _make_fcp_kernel(level_meta):
    """Build the fused FCP kernel for a static level configuration."""

    def kernel(x_ref, *refs):
        out_ref = refs[-1]
        param_refs = refs[:-1]

        # Running feature map: (Cin, bt*H*W), channels on sublanes, (batch, spatial) on
        # lanes.  Kept in f32 registers through the whole chain (out_ref is never read
        # back, so no level-to-level rounding and no RAW stall on the stores).
        cur = x_ref[...].astype(jnp.float32)

        p = 0
        for lvl in level_meta:
            w = param_refs[p][...]                      # (Cout, Cin), BN scale pre-folded
            bias = param_refs[p + 1][...]               # (Cout, 1) f32
            p += 2
            resize_op = None
            if lvl["resize"]:
                resize_op = param_refs[p][...]          # (bt*Hin*Win, bt*Hout*Wout) bf16
                p += 1

            cout, cin, r0 = lvl["cout"], lvl["cin"], lvl["row_off"]

            # 1x1 conv with batch folded into lanes.
            if lvl["use_mxu"]:
                # bf16 operands, f32 accumulation (native MXU dtype on v5e/v6e/v7x).
                y = jnp.dot(w, cur.astype(w.dtype), preferred_element_type=jnp.float32)
            else:
                # Tiny contraction: broadcast-multiply-accumulate on the VPU instead of a
                # heavily padded MXU matmul (shifts work to a unit with slack).
                y = w[:, 0:1] * cur[0:1, :]
                for c in range(1, cin):
                    y = y + w[:, c:c + 1] * cur[c:c + 1, :]

            if resize_op is not None:
                # Whole-level bilinear resize as ONE matmul (K = bt*Hin*Win), replacing
                # the per-(batch,row) slab loops, the scratch round-trip and the
                # sub-128-lane masked stores of the previous version.
                y = jnp.dot(y.astype(resize_op.dtype), resize_op,
                            preferred_element_type=jnp.float32)

            act = jnp.maximum(y + bias, 0.0)            # f32, (Cout, bt*Hout*Wout)

            # Single lane-dense store into this level's channel rows of the concat slab.
            out_ref[r0:r0 + cout, :] = act.astype(out_ref.dtype)

            # Next level consumes the f32 value already in registers.
            cur = act

    return kernel


def fcp_forward(x, params):
    """FCP.forward: every level fused into one Pallas call; returns (B, sum Cout_i, Ho, Wo)."""
    batch, c_in, h_in, w_in = x.shape
    if not params:
        raise ValueError("FCP needs at least one level")
    hout, wout = params[0]["out_hw"]
    sout = hout * wout
    sin0 = h_in * w_in

    bt = _pick_batch_tile(batch, sin0, sout)

    level_meta, inputs, in_specs = [], [], []
    row_off, flops = 0, 0
    cin, hcur, wcur = c_in, h_in, w_in
    for p in params:
        ph, pw = p["out_hw"]
        if (ph, pw) != (hout, wout):
            raise ValueError("all FCP levels must share one output spatial size (concat)")
        cout, cin_w = p["w"].shape
        if cin_w != cin:
            raise ValueError("channel chain mismatch")
        resize = (ph, pw) != (hcur, wcur)
        use_mxu = cin >= _MXU_MIN_K

        # Fold the (eval-mode) BatchNorm scale into the conv weight.  Valid because the
        # 1x1 conv is bias-free and both conv (channel) and bilinear resize (spatial) are
        # linear and commute; the BN bias is applied after the resize, exactly where the
        # reference applies it.
        w_folded = (p["w"] * p["scale"]).astype(jnp.bfloat16 if use_mxu else jnp.float32)
        bias = p["bias"].astype(jnp.float32).reshape(cout, 1)
        inputs += [w_folded, bias]
        in_specs += [pl.BlockSpec((cout, cin), lambda b: (0, 0)),
                     pl.BlockSpec((cout, 1), lambda b: (0, 0))]
        flops += 2 * cout * cin * batch * hcur * wcur
        if resize:
            rop = _resize_operator(hcur, wcur, ph, pw, bt, jnp.bfloat16)
            inputs.append(rop)
            in_specs.append(pl.BlockSpec(rop.shape, lambda b: (0, 0)))
            flops += 2 * cout * (bt * hcur * wcur) * (bt * ph * pw) * (batch // bt)

        level_meta.append(dict(cout=cout, cin=cin, resize=resize,
                               use_mxu=use_mxu, row_off=row_off))
        row_off += cout
        cin, hcur, wcur = cout, ph, pw

    ctot = row_off

    # Channels on sublanes, (batch, spatial) flattened on lanes.
    # TODO(synk): this transpose (and the inverse one on the output) is a whole-array HBM
    # pass; kept because it buys lane-dense (>=128-wide) kernel blocks, which the review
    # rates as the bigger win at these shapes.
    x_flat = jnp.transpose(x, (1, 0, 2, 3)).reshape(c_in, batch * sin0)

    # Size the VMEM request from the actual buffers (double-buffered x/out blocks +
    # resident constants) instead of a hardcoded limit.
    itemsize = jnp.dtype(x.dtype).itemsize
    block_bytes = (c_in * bt * sin0 + ctot * bt * sout) * 4
    param_bytes = sum(int(a.size) * jnp.dtype(a.dtype).itemsize for a in inputs)
    vmem_bytes = int(min(128 * 1024 * 1024, 2 * (block_bytes + param_bytes) + (4 << 20)))

    bytes_accessed = int(x_flat.size) * itemsize + ctot * batch * sout * itemsize + param_bytes
    cost = pl.CostEstimate(flops=int(flops), transcendentals=0,
                           bytes_accessed=int(bytes_accessed))

    out_flat = pl.pallas_call(
        _make_fcp_kernel(level_meta),
        out_shape=jax.ShapeDtypeStruct((ctot, batch * sout), x.dtype),
        grid_spec=pltpu.PrefetchScalarGridSpec(
            num_scalar_prefetch=0,
            grid=(batch // bt,),
            in_specs=[pl.BlockSpec((c_in, bt * sin0), lambda b: (0, b))] + in_specs,
            out_specs=pl.BlockSpec((ctot, bt * sout), lambda b: (0, b)),
        ),
        compiler_params=pltpu.CompilerParams(
            dimension_semantics=("parallel",),
            vmem_limit_bytes=vmem_bytes,
        ),
        cost_estimate=cost,
    )(x_flat, *inputs)

    return out_flat.reshape(ctot, batch, hout, wout).transpose(1, 0, 2, 3)


def init_fcp_params(key, bins_shapes, dtype=jnp.float32, eps=1e-5):
    """Deterministic synthetic parameters.  bins_shapes[i] = (B, C, H, W) of bins[i].

    bins[0] only feeds the (dead) interpolation done inside the reference __init__ and
    does not affect the forward pass.
    """
    params = []
    for i in range(len(bins_shapes) - 1):
        _, c, ht, wt = bins_shapes[i + 1]
        cout = c // 2
        key, kw, kg, kb = jax.random.split(key, 4)
        w = jax.random.normal(kw, (cout, c), dtype) / jnp.sqrt(jnp.asarray(c, dtype))
        gamma = 1.0 + 0.1 * jax.random.normal(kg, (cout,), dtype)
        beta = 0.1 * jax.random.normal(kb, (cout,), dtype)
        running_mean = jnp.zeros((cout,), dtype)
        running_var = jnp.ones((cout,), dtype)
        # TODO(synk): BatchNorm implemented with eval-mode (running-stats) semantics;
        # training-mode batch statistics are not computed in-kernel.
        scale = gamma / jnp.sqrt(running_var + eps)
        bias = beta - running_mean * scale
        params.append(dict(out_hw=(ht, wt), w=w,
                           scale=scale.reshape(cout, 1), bias=bias.reshape(cout, 1)))
    return params


def fcp_reference(x, params):
    """Pure-JAX reference with the reference op order (resize -> conv -> BN -> ReLU, concat)."""
    outs = []
    for p in params:
        _, _, h, w = x.shape
        ht, wt = p["out_hw"]
        ry = _linear_interp_matrix(ht, h)
        rx = _linear_interp_matrix(wt, w)
        up = jnp.einsum("oh,bchw,pw->bcop", ry, x, rx)
        y = jnp.einsum("kc,bcop->bkop", p["w"], up)
        y = y * p["scale"].reshape(1, -1, 1, 1) + p["bias"].reshape(1, -1, 1, 1)
        x = jnp.maximum(y, 0.0)
        outs.append(x)
    return jnp.concatenate(outs, axis=1)


if __name__ == "__main__":
    key = jax.random.PRNGKey(0)
    B = 4
    # Conceptual bins:  bins[0]=(B,8,16,16) (unused in forward),
    #                   bins[1]=(B,8,8,8),  bins[2]=(B,4,8,8)
    # Channel chain: level0 conv 8->4 (16x16 -> 8x8 resize), level1 conv 4->2 (identity).
    bins_shapes = [(B, 8, 16, 16), (B, 8, 8, 8), (B, 4, 8, 8)]

    key, kx, kp = jax.random.split(key, 3)
    x = jax.random.normal(kx, (B, 8, 16, 16), jnp.float32)
    params = init_fcp_params(kp, bins_shapes)

    out = jax.block_until_ready(fcp_forward(x, params))

    assert out.shape == (B, 4 + 2, 8, 8), out.shape
    ref = fcp_reference(x, params)
    if not jnp.allclose(out, ref, rtol=5e-2, atol=5e-2):
        raise AssertionError("Pallas kernel output does not match JAX reference")
    print("KERNEL_OK")
</pallas_src>

<mosaic_0001>
module attributes {stable_mosaic.version = 11 : i64} {
  func.func @kernel(%arg0: i32, %arg1: memref<8x512xf32, #tpu.memory_space<vmem>>, %arg2: memref<4x8xf32, #tpu.memory_space<vmem>>, %arg3: memref<4x1xf32, #tpu.memory_space<vmem>>, %arg4: memref<512x128xbf16, #tpu.memory_space<vmem>>, %arg5: memref<2x4xf32, #tpu.memory_space<vmem>>, %arg6: memref<2x1xf32, #tpu.memory_space<vmem>>, %arg7: memref<6x128xf32, #tpu.memory_space<vmem>>) attributes {dimension_semantics = [#tpu.dimension_semantics<parallel>], iteration_bounds = array<i64: 2>, scalar_prefetch = 0 : i64, scratch_operands = 0 : i64, tpu.core_type = #tpu.core_type<tc>, window_params = [{transform_indices = @transform_0, window_bounds = array<i64: 8, 512>}, {pipeline_mode = #tpu.pipeline_mode<synchronous>, transform_indices = @transform_1, window_bounds = array<i64: 4, 8>}, {pipeline_mode = #tpu.pipeline_mode<synchronous>, transform_indices = @transform_2, window_bounds = array<i64: 4, 1>}, {pipeline_mode = #tpu.pipeline_mode<synchronous>, transform_indices = @transform_3, window_bounds = array<i64: 512, 128>}, {pipeline_mode = #tpu.pipeline_mode<synchronous>, transform_indices = @transform_4, window_bounds = array<i64: 2, 4>}, {pipeline_mode = #tpu.pipeline_mode<synchronous>, transform_indices = @transform_5, window_bounds = array<i64: 2, 1>}, {transform_indices = @transform_6, window_bounds = array<i64: 6, 128>}]} {
    %c0 = arith.constant 0 : index
    %c0_0 = arith.constant 0 : index
    %0 = vector.load %arg1[%c0, %c0_0] : memref<8x512xf32, #tpu.memory_space<vmem>>, vector<8x512xf32>
    %c0_1 = arith.constant 0 : index
    %c0_2 = arith.constant 0 : index
    %1 = vector.load %arg2[%c0_1, %c0_2] : memref<4x8xf32, #tpu.memory_space<vmem>>, vector<4x8xf32>
    %c0_3 = arith.constant 0 : index
    %c0_4 = arith.constant 0 : index
    %2 = vector.load %arg3[%c0_3, %c0_4] : memref<4x1xf32, #tpu.memory_space<vmem>>, vector<4x1xf32>
    %c0_5 = arith.constant 0 : index
    %c0_6 = arith.constant 0 : index
    %3 = vector.load %arg4[%c0_5, %c0_6] : memref<512x128xbf16, #tpu.memory_space<vmem>>, vector<512x128xbf16>
    %4 = vector.extract_strided_slice %1 {offsets = [0, 0], sizes = [4, 1], strides = [1, 1]} : vector<4x8xf32> to vector<4x1xf32>
    %5 = vector.extract_strided_slice %0 {offsets = [0, 0], sizes = [1, 512], strides = [1, 1]} : vector<8x512xf32> to vector<1x512xf32>
    %6 = vector.broadcast %4 : vector<4x1xf32> to vector<4x512xf32>
    %7 = vector.broadcast %5 : vector<1x512xf32> to vector<4x512xf32>
    %8 = arith.mulf %6, %7 : vector<4x512xf32>
    %9 = vector.extract_strided_slice %1 {offsets = [0, 1], sizes = [4, 1], strides = [1, 1]} : vector<4x8xf32> to vector<4x1xf32>
    %10 = vector.extract_strided_slice %0 {offsets = [1, 0], sizes = [1, 512], strides = [1, 1]} : vector<8x512xf32> to vector<1x512xf32>
    %11 = vector.broadcast %9 : vector<4x1xf32> to vector<4x512xf32>
    %12 = vector.broadcast %10 : vector<1x512xf32> to vector<4x512xf32>
    %13 = arith.mulf %11, %12 : vector<4x512xf32>
    %14 = arith.addf %8, %13 : vector<4x512xf32>
    %15 = vector.extract_strided_slice %1 {offsets = [0, 2], sizes = [4, 1], strides = [1, 1]} : vector<4x8xf32> to vector<4x1xf32>
    %16 = vector.extract_strided_slice %0 {offsets = [2, 0], sizes = [1, 512], strides = [1, 1]} : vector<8x512xf32> to vector<1x512xf32>
    %17 = vector.broadcast %15 : vector<4x1xf32> to vector<4x512xf32>
    %18 = vector.broadcast %16 : vector<1x512xf32> to vector<4x512xf32>
    %19 = arith.mulf %17, %18 : vector<4x512xf32>
    %20 = arith.addf %14, %19 : vector<4x512xf32>
    %21 = vector.extract_strided_slice %1 {offsets = [0, 3], sizes = [4, 1], strides = [1, 1]} : vector<4x8xf32> to vector<4x1xf32>
    %22 = vector.extract_strided_slice %0 {offsets = [3, 0], sizes = [1, 512], strides = [1, 1]} : vector<8x512xf32> to vector<1x512xf32>
    %23 = vector.broadcast %21 : vector<4x1xf32> to vector<4x512xf32>
    %24 = vector.broadcast %22 : vector<1x512xf32> to vector<4x512xf32>
    %25 = arith.mulf %23, %24 : vector<4x512xf32>
    %26 = arith.addf %20, %25 : vector<4x512xf32>
    %27 = vector.extract_strided_slice %1 {offsets = [0, 4], sizes = [4, 1], strides = [1, 1]} : vector<4x8xf32> to vector<4x1xf32>
    %28 = vector.extract_strided_slice %0 {offsets = [4, 0], sizes = [1, 512], strides = [1, 1]} : vector<8x512xf32> to vector<1x512xf32>
    %29 = vector.broadcast %27 : vector<4x1xf32> to vector<4x512xf32>
    %30 = vector.broadcast %28 : vector<1x512xf32> to vector<4x512xf32>
    %31 = arith.mulf %29, %30 : vector<4x512xf32>
    %32 = arith.addf %26, %31 : vector<4x512xf32>
    %33 = vector.extract_strided_slice %1 {offsets = [0, 5], sizes = [4, 1], strides = [1, 1]} : vector<4x8xf32> to vector<4x1xf32>
    %34 = vector.extract_strided_slice %0 {offsets = [5, 0], sizes = [1, 512], strides = [1, 1]} : vector<8x512xf32> to vector<1x512xf32>
    %35 = vector.broadcast %33 : vector<4x1xf32> to vector<4x512xf32>
    %36 = vector.broadcast %34 : vector<1x512xf32> to vector<4x512xf32>
    %37 = arith.mulf %35, %36 : vector<4x512xf32>
    %38 = arith.addf %32, %37 : vector<4x512xf32>
    %39 = vector.extract_strided_slice %1 {offsets = [0, 6], sizes = [4, 1], strides = [1, 1]} : vector<4x8xf32> to vector<4x1xf32>
    %40 = vector.extract_strided_slice %0 {offsets = [6, 0], sizes = [1, 512], strides = [1, 1]} : vector<8x512xf32> to vector<1x512xf32>
    %41 = vector.broadcast %39 : vector<4x1xf32> to vector<4x512xf32>
    %42 = vector.broadcast %40 : vector<1x512xf32> to vector<4x512xf32>
    %43 = arith.mulf %41, %42 : vector<4x512xf32>
    %44 = arith.addf %38, %43 : vector<4x512xf32>
    %45 = vector.extract_strided_slice %1 {offsets = [0, 7], sizes = [4, 1], strides = [1, 1]} : vector<4x8xf32> to vector<4x1xf32>
    %46 = vector.extract_strided_slice %0 {offsets = [7, 0], sizes = [1, 512], strides = [1, 1]} : vector<8x512xf32> to vector<1x512xf32>
    %47 = vector.broadcast %45 : vector<4x1xf32> to vector<4x512xf32>
    %48 = vector.broadcast %46 : vector<1x512xf32> to vector<4x512xf32>
    %49 = arith.mulf %47, %48 : vector<4x512xf32>
    %50 = arith.addf %44, %49 : vector<4x512xf32>
    %51 = arith.truncf %50 : vector<4x512xf32> to vector<4x512xbf16>
    %cst = arith.constant dense<0.000000e+00> : vector<4x128xf32>
    %52 = tpu.matmul %51, %3, %cst {dimension_numbers = #tpu.dot_dimension_numbers<[1], [0], [0], [1], [0, 0, 1, 1], [], []>} : vector<4x512xbf16>, vector<512x128xbf16>, vector<4x128xf32> -> vector<4x128xf32>
    %53 = vector.broadcast %2 : vector<4x1xf32> to vector<4x128xf32>
    %54 = arith.addf %52, %53 : vector<4x128xf32>
    %cst_7 = arith.constant 0.000000e+00 : f32
    %55 = vector.broadcast %cst_7 : f32 to vector<4x128xf32>
    %56 = arith.maximumf %54, %55 : vector<4x128xf32>
    %c0_8 = arith.constant 0 : index
    %c0_9 = arith.constant 0 : index
    %57 = vector.load %arg7[%c0_8, %c0_9] : memref<6x128xf32, #tpu.memory_space<vmem>>, vector<4x128xf32>
    tpu.vector_store %arg7[%c0_8, %c0_9], %56 {strides = array<i32>} : memref<6x128xf32, #tpu.memory_space<vmem>>, vector<4x128xf32>,
    %c0_10 = arith.constant 0 : index
    %c0_11 = arith.constant 0 : index
    %58 = vector.load %arg5[%c0_10, %c0_11] : memref<2x4xf32, #tpu.memory_space<vmem>>, vector<2x4xf32>
    %c0_12 = arith.constant 0 : index
    %c0_13 = arith.constant 0 : index
    %59 = vector.load %arg6[%c0_12, %c0_13] : memref<2x1xf32, #tpu.memory_space<vmem>>, vector<2x1xf32>
    %60 = vector.extract_strided_slice %58 {offsets = [0, 0], sizes = [2, 1], strides = [1, 1]} : vector<2x4xf32> to vector<2x1xf32>
    %61 = vector.extract_strided_slice %56 {offsets = [0, 0], sizes = [1, 128], strides = [1, 1]} : vector<4x128xf32> to vector<1x128xf32>
    %62 = vector.broadcast %60 : vector<2x1xf32> to vector<2x128xf32>
    %63 = vector.broadcast %61 : vector<1x128xf32> to vector<2x128xf32>
    %64 = arith.mulf %62, %63 : vector<2x128xf32>
    %65 = vector.extract_strided_slice %58 {offsets = [0, 1], sizes = [2, 1], strides = [1, 1]} : vector<2x4xf32> to vector<2x1xf32>
    %66 = vector.extract_strided_slice %56 {offsets = [1, 0], sizes = [1, 128], strides = [1, 1]} : vector<4x128xf32> to vector<1x128xf32>
    %67 = vector.broadcast %65 : vector<2x1xf32> to vector<2x128xf32>
    %68 = vector.broadcast %66 : vector<1x128xf32> to vector<2x128xf32>
    %69 = arith.mulf %67, %68 : vector<2x128xf32>
    %70 = arith.addf %64, %69 : vector<2x128xf32>
    %71 = vector.extract_strided_slice %58 {offsets = [0, 2], sizes = [2, 1], strides = [1, 1]} : vector<2x4xf32> to vector<2x1xf32>
    %72 = vector.extract_strided_slice %56 {offsets = [2, 0], sizes = [1, 128], strides = [1, 1]} : vector<4x128xf32> to vector<1x128xf32>
    %73 = vector.broadcast %71 : vector<2x1xf32> to vector<2x128xf32>
    %74 = vector.broadcast %72 : vector<1x128xf32> to vector<2x128xf32>
    %75 = arith.mulf %73, %74 : vector<2x128xf32>
    %76 = arith.addf %70, %75 : vector<2x128xf32>
    %77 = vector.extract_strided_slice %58 {offsets = [0, 3], sizes = [2, 1], strides = [1, 1]} : vector<2x4xf32> to vector<2x1xf32>
    %78 = vector.extract_strided_slice %56 {offsets = [3, 0], sizes = [1, 128], strides = [1, 1]} : vector<4x128xf32> to vector<1x128xf32>
    %79 = vector.broadcast %77 : vector<2x1xf32> to vector<2x128xf32>
    %80 = vector.broadcast %78 : vector<1x128xf32> to vector<2x128xf32>
    %81 = arith.mulf %79, %80 : vector<2x128xf32>
    %82 = arith.addf %76, %81 : vector<2x128xf32>
    %83 = vector.broadcast %59 : vector<2x1xf32> to vector<2x128xf32>
    %84 = arith.addf %82, %83 : vector<2x128xf32>
    %cst_14 = arith.constant 0.000000e+00 : f32
    %85 = vector.broadcast %cst_14 : f32 to vector<2x128xf32>
    %86 = arith.maximumf %84, %85 : vector<2x128xf32>
    %c4 = arith.constant 4 : index
    %c0_15 = arith.constant 0 : index
    %87 = vector.load %arg7[%c4, %c0_15] : memref<6x128xf32, #tpu.memory_space<vmem>>, vector<2x128xf32>
    tpu.vector_store %arg7[%c4, %c0_15], %86 {strides = array<i32>} : memref<6x128xf32, #tpu.memory_space<vmem>>, vector<2x128xf32>,
    return
  }
  func.func @transform_0(%arg0: i32) -> (i32, i32) {
    %c0_i32 = arith.constant 0 : i32
    %c0_i32_0 = arith.constant 0 : i32
    return %c0_i32, %arg0 : i32, i32
  }
  func.func @transform_1(%arg0: i32) -> (i32, i32) {
    %c0_i32 = arith.constant 0 : i32
    %c0_i32_0 = arith.constant 0 : i32
    %c0_i32_1 = arith.constant 0 : i32
    return %c0_i32, %c0_i32_0 : i32, i32
  }
  func.func @transform_2(%arg0: i32) -> (i32, i32) {
    %c0_i32 = arith.constant 0 : i32
    %c0_i32_0 = arith.constant 0 : i32
    %c0_i32_1 = arith.constant 0 : i32
    return %c0_i32, %c0_i32_0 : i32, i32
  }
  func.func @transform_3(%arg0: i32) -> (i32, i32) {
    %c0_i32 = arith.constant 0 : i32
    %c0_i32_0 = arith.constant 0 : i32
    %c0_i32_1 = arith.constant 0 : i32
    return %c0_i32, %c0_i32_0 : i32, i32
  }
  func.func @transform_4(%arg0: i32) -> (i32, i32) {
    %c0_i32 = arith.constant 0 : i32
    %c0_i32_0 = arith.constant 0 : i32
    %c0_i32_1 = arith.constant 0 : i32
    return %c0_i32, %c0_i32_0 : i32, i32
  }
  func.func @transform_5(%arg0: i32) -> (i32, i32) {
    %c0_i32 = arith.constant 0 : i32
    %c0_i32_0 = arith.constant 0 : i32
    %c0_i32_1 = arith.constant 0 : i32
    return %c0_i32, %c0_i32_0 : i32, i32
  }
  func.func @transform_6(%arg0: i32) -> (i32, i32) {
    %c0_i32 = arith.constant 0 : i32
    %c0_i32_0 = arith.constant 0 : i32
    return %c0_i32, %arg0 : i32, i32
  }
}

</mosaic_0001>

<llo_original>
// kernel: tpu_custom_call.1
$region0: #{tpu_custom_call.1}
  #allocation0 [shape = 'u32[]', space=smem, size = 0x4, offset = 0x4, fixed_abs, tag = 'smem constant byte address 0x4 - core index']
  #allocation1 [shape = 'u32[144,128]{1,0:T(1,128)}', space=vmem, size = 0x12000, scoped, tag = 'internal scratch']
  %s0 = inlined_call_operand.hbm [shape: f32[8,1024], index: 0, kind: input, shape index: {}]
  %s1 = inlined_call_operand.vmem [shape: f32[4,8], index: 1, kind: input, shape index: {}]
  %s2 = inlined_call_operand.vmem [shape: f32[4,1], index: 2, kind: input, shape index: {}]
  %s3 = inlined_call_operand.hbm [shape: bf16[512,128], index: 3, kind: input, shape index: {}]
  %s4 = inlined_call_operand.vmem [shape: f32[2,4], index: 4, kind: input, shape index: {}]
  %s5 = inlined_call_operand.vmem [shape: f32[2,1], index: 5, kind: input, shape index: {}]
  %s6 = inlined_call_operand.hbm [shape: f32[6,256], index: 6, kind: output, shape index: {}]
  %s7 = sld [smem:[#allocation0]]
  $region65: #{tpu_custom_call.1} parent=0
    _
  %s9 = ssub.s32 1, %s7
  %s10 = scalar_select 0, %s9, %s7
  $region1: #{tpu_custom_call.1} parent=0
    #allocation2 [shape = 'u8[32768]{0}', space=vmem, size = 0x8000, scoped, tag = 'input window, operand 0']
    #allocation3 [shape = 's32[2]{0}', space=sflag, size = 0x8, scoped, tag = 'scoped memory for tpu_custom_call.1']
    #allocation4 [shape = 's32[2]{0}', space=sflag, size = 0x8, scoped, tag = 'scoped memory for tpu_custom_call.1']
    #allocation5 [shape = 'u8[131072]{0}', space=vmem, size = 0x20000, scoped, tag = 'input window, operand 3, single buffered']
    #allocation6 [shape = 's32[1]{0}', space=sflag, size = 0x4, scoped, tag = 'scoped memory for tpu_custom_call.1']
    #allocation7 [shape = 'u8[8192]{0}', space=vmem, size = 0x2000, scoped, tag = 'output window, operand 0']
    %11 = vsyncpa [#allocation3], 0
    %s12 = scalar_lea.sflag [#allocation3], 1
    %13 = vsyncpa %s12, 0
    %14 = vsyncpa [#allocation6], 0
    %15 = vsyncpa [#allocation4], 0
    %s16 = scalar_lea.sflag [#allocation4], 1
    %17 = vsyncpa %s16, 0
    loop: start=0, step=1, limit=4
    $region2: #{tpu_custom_call.1} parent=1 // loop_pre_header
      _
    $region3: #{tpu_custom_call.1} parent=1 // loop_header
      %s19 = sphi 0, %s23
      %p20 = scmp.ge.s32.totalorder %s19, 4
      %s29 = sphi 0, %s31
      %s32 = sphi 0, %s29
      %s33 = sphi 0, %s32
      %s49 = sphi 0, %s33
      %s53 = sphi 0, %s53
      %s55 = sphi 0, %s53
      %s56 = sphi 0, %s55
      %s70 = sphi 0, %s56
      %s74 = sphi 0, %s74
      %s76 = sphi 0, %s74
      %s77 = sphi 0, %s76
      %s91 = sphi 0, %s77
      %s95 = sphi 0, %s95
      %s97 = sphi 0, %s95
      %s98 = sphi 0, %s97
      %s112 = sphi 0, %s98
      %s116 = sphi 0, %s116
      %s118 = sphi 0, %s116
      %s119 = sphi 0, %s118
      %s133 = sphi 0, %s119
      %s137 = sphi 0, %s137
      %s139 = sphi 0, %s137
      %s140 = sphi 0, %s139
      %s154 = sphi 0, %s140
      %s160 = sphi 0, %s162
      %s163 = sphi 0, %s160
      %s164 = sphi 0, %s163
      %s180 = sphi 0, %s164
    $region4: #{tpu_custom_call.1} parent=1 // loop_header_branch
      %22 = sbr.rel (%p20) target = $region8
    $region5: #{tpu_custom_call.1} parent=1 // loop_body
      %s24 = ssub.s32 %s19, 1
      %s25 = ssub.s32 %s19, 2
      %s26 = sadd.s32 %s19, 1
      %s27 = ssub.s32 %s19, %s26
      %p28 = scmp.eq.s32.totalorder %s27, 0
      %s30 = sadd.s32 %s29, 1
      %s31 = scalar_select %p28, %s29, %s30
      %p34 = pneg %p28
      %p35 = scmp.eq.s32.totalorder %s19, 1
      %p36 = por %p34, %p35
      %p37 = scmp.ne.s32.totalorder %s29, %s32
      %p38 = scmp.eq.s32.totalorder %s19, 0
      %p39 = por %p37, %p38
      %p40 = scmp.ne.s32.totalorder %s29, %s32
      %p41 = scmp.eq.s32.totalorder %s24, 1
      %p42 = por %p40, %p41
      %p43 = scmp.ne.s32.totalorder %s32, %s33
      %p44 = scmp.eq.s32.totalorder %s24, 0
      %p45 = por %p43, %p44
      %p46 = scmp.ne.s32.totalorder %s32, %s33
      %p47 = scmp.eq.s32.totalorder %s25, 1
      %p48 = por %p46, %p47
      %p50 = scmp.ne.s32.totalorder %s33, %s49
      %p51 = scmp.eq.s32.totalorder %s25, 0
      %p52 = por %p50, %p51
      %s54 = sadd.s32 %s53, 1
      %p57 = scmp.eq.s32.totalorder %s19, 1
      %p58 = scmp.ne.s32.totalorder %s53, %s55
      %p59 = scmp.eq.s32.totalorder %s19, 0
      %p60 = por %p58, %p59
      %p61 = scmp.ne.s32.totalorder %s53, %s55
      %p62 = scmp.eq.s32.totalorder %s24, 1
      %p63 = por %p61, %p62
      %p64 = scmp.ne.s32.totalorder %s55, %s56
      %p65 = scmp.eq.s32.totalorder %s24, 0
      %p66 = por %p64, %p65
      %p67 = scmp.ne.s32.totalorder %s55, %s56
      %p68 = scmp.eq.s32.totalorder %s25, 1
      %p69 = por %p67, %p68
      %p71 = scmp.ne.s32.totalorder %s56, %s70
      %p72 = scmp.eq.s32.totalorder %s25, 0
      %p73 = por %p71, %p72
      %s75 = sadd.s32 %s74, 1
      %p78 = scmp.eq.s32.totalorder %s19, 1
      %p79 = scmp.ne.s32.totalorder %s74, %s76
      %p80 = scmp.eq.s32.totalorder %s19, 0
      %p81 = por %p79, %p80
      %p82 = scmp.ne.s32.totalorder %s74, %s76
      %p83 = scmp.eq.s32.totalorder %s24, 1
      %p84 = por %p82, %p83
      %p85 = scmp.ne.s32.totalorder %s76, %s77
      %p86 = scmp.eq.s32.totalorder %s24, 0
      %p87 = por %p85, %p86
      %p88 = scmp.ne.s32.totalorder %s76, %s77
      %p89 = scmp.eq.s32.totalorder %s25, 1
      %p90 = por %p88, %p89
      %p92 = scmp.ne.s32.totalorder %s77, %s91
      %p93 = scmp.eq.s32.totalorder %s25, 0
      %p94 = por %p92, %p93
      %s96 = sadd.s32 %s95, 1
      %p99 = scmp.eq.s32.totalorder %s19, 1
      %p100 = scmp.ne.s32.totalorder %s95, %s97
      %p101 = scmp.eq.s32.totalorder %s19, 0
      %p102 = por %p100, %p101
      %p103 = scmp.ne.s32.totalorder %s95, %s97
      %p104 = scmp.eq.s32.totalorder %s24, 1
      %p105 = por %p103, %p104
      %p106 = scmp.ne.s32.totalorder %s97, %s98
      %p107 = scmp.eq.s32.totalorder %s24, 0
      %p108 = por %p106, %p107
      %p109 = scmp.ne.s32.totalorder %s97, %s98
      %p110 = scmp.eq.s32.totalorder %s25, 1
      %p111 = por %p109, %p110
      %p113 = scmp.ne.s32.totalorder %s98, %s112
      %p114 = scmp.eq.s32.totalorder %s25, 0
      %p115 = por %p113, %p114
      %s117 = sadd.s32 %s116, 1
      %p120 = scmp.eq.s32.totalorder %s19, 1
      %p121 = scmp.ne.s32.totalorder %s116, %s118
      %p122 = scmp.eq.s32.totalorder %s19, 0
      %p123 = por %p121, %p122
      %p124 = scmp.ne.s32.totalorder %s116, %s118
      %p125 = scmp.eq.s32.totalorder %s24, 1
      %p126 = por %p124, %p125
      %p127 = scmp.ne.s32.totalorder %s118, %s119
      %p128 = scmp.eq.s32.totalorder %s24, 0
      %p129 = por %p127, %p128
      %p130 = scmp.ne.s32.totalorder %s118, %s119
      %p131 = scmp.eq.s32.totalorder %s25, 1
      %p132 = por %p130, %p131
      %p134 = scmp.ne.s32.totalorder %s119, %s133
      %p135 = scmp.eq.s32.totalorder %s25, 0
      %p136 = por %p134, %p135
      %s138 = sadd.s32 %s137, 1
      %p141 = scmp.eq.s32.totalorder %s19, 1
      %p142 = scmp.ne.s32.totalorder %s137, %s139
      %p143 = scmp.eq.s32.totalorder %s19, 0
      %p144 = por %p142, %p143
      %p145 = scmp.ne.s32.totalorder %s137, %s139
      %p146 = scmp.eq.s32.totalorder %s24, 1
      %p147 = por %p145, %p146
      %p148 = scmp.ne.s32.totalorder %s139, %s140
      %p149 = scmp.eq.s32.totalorder %s24, 0
      %p150 = por %p148, %p149
      %p151 = scmp.ne.s32.totalorder %s139, %s140
      %p152 = scmp.eq.s32.totalorder %s25, 1
      %p153 = por %p151, %p152
      %p155 = scmp.ne.s32.totalorder %s140, %s154
      %p156 = scmp.eq.s32.totalorder %s25, 0
      %p157 = por %p155, %p156
      %s158 = ssub.s32 %s19, %s26
      %p159 = scmp.eq.s32.totalorder %s158, 0
      %s161 = sadd.s32 %s160, 1
      %s162 = scalar_select %p159, %s160, %s161
      %p165 = pneg %p159
      %p166 = scmp.eq.s32.totalorder %s19, 1
      %p167 = por %p165, %p166
      %p168 = scmp.ne.s32.totalorder %s160, %s163
      %p169 = scmp.eq.s32.totalorder %s19, 0
      %p170 = por %p168, %p169
      %p171 = scmp.ne.s32.totalorder %s160, %s163
      %p172 = scmp.eq.s32.totalorder %s24, 1
      %p173 = por %p171, %p172
      %p174 = scmp.ne.s32.totalorder %s163, %s164
      %p175 = scmp.eq.s32.totalorder %s24, 0
      %p176 = por %p174, %p175
      %p177 = scmp.ne.s32.totalorder %s163, %s164
      %p178 = scmp.eq.s32.totalorder %s25, 1
      %p179 = por %p177, %p178
      %p181 = scmp.ne.s32.totalorder %s164, %s180
      %p182 = scmp.eq.s32.totalorder %s25, 0
      %p183 = por %p181, %p182
      %p184 = scmp.le.s32.totalorder 1, %s19
      %p185 = scmp.lt.s32.totalorder %s19, 3
      %p186 = pnand %p184, %p185
      %p187 = pneg %p186
      // Predicated region
      $region9: #{tpu_custom_call.1} parent=5 // pred_check
        _
      $region10: #{tpu_custom_call.1} parent=5 // pred_check_branch
        %189 = sbr.rel (%p186) target = $region12
      $region11: #{tpu_custom_call.1} parent=5 // pred_region
        %s190 = ssub.s32 %s19, 1
        // Predicated region
        $region13: #{tpu_custom_call.1} parent=11 // pred_check
          %p191 = pneg %p66
        $region14: #{tpu_custom_call.1} parent=11 // pred_check_branch
          %193 = sbr.rel (%p191) target = $region16
        $region15: #{tpu_custom_call.1} parent=11 // pred_region
          _
        $region16: #{tpu_custom_call.1} parent=11 // pred_fallthru
          _
        // Predicated region
        $region17: #{tpu_custom_call.1} parent=11 // pred_check
          %p194 = pneg %p87
        $region18: #{tpu_custom_call.1} parent=11 // pred_check_branch
          %196 = sbr.rel (%p194) target = $region20
        $region19: #{tpu_custom_call.1} parent=11 // pred_region
          _
        $region20: #{tpu_custom_call.1} parent=11 // pred_fallthru
          _
        // Predicated region
        $region21: #{tpu_custom_call.1} parent=11 // pred_check
          %p197 = pneg %p108
        $region22: #{tpu_custom_call.1} parent=11 // pred_check_branch
          %199 = sbr.rel (%p197) target = $region24
        $region23: #{tpu_custom_call.1} parent=11 // pred_region
          %s201 = ssub.s32 4096, 4096
          %202 = vsyncadd [#allocation6], %s201
          %s203 = sshll.u32 [#allocation5], 4
          %s204 = int_to_ptr.vmem [resolvable:$true] %s203
          %209 = dma.hbm_to_vmem [thread:$0]  %s3, 4096, %s204, [#allocation6], 64, 64, 4
        $region24: #{tpu_custom_call.1} parent=11 // pred_fallthru
          _
        // Predicated region
        $region25: #{tpu_custom_call.1} parent=11 // pred_check
          %p210 = pneg %p129
        $region26: #{tpu_custom_call.1} parent=11 // pred_check_branch
          %212 = sbr.rel (%p210) target = $region28
        $region27: #{tpu_custom_call.1} parent=11 // pred_region
          _
        $region28: #{tpu_custom_call.1} parent=11 // pred_fallthru
          _
        // Predicated region
        $region29: #{tpu_custom_call.1} parent=11 // pred_check
          %p213 = pneg %p150
        $region30: #{tpu_custom_call.1} parent=11 // pred_check_branch
          %215 = sbr.rel (%p213) target = $region32
        $region31: #{tpu_custom_call.1} parent=11 // pred_region
          _
        $region32: #{tpu_custom_call.1} parent=11 // pred_fallthru
          _
      $region12: #{tpu_custom_call.1} parent=5 // pred_fallthru
        _
      %p216 = scmp.lt.s32.totalorder %s19, 2
      // Predicated region
      $region33: #{tpu_custom_call.1} parent=5 // pred_check
        %p217 = pneg %p216
      $region34: #{tpu_custom_call.1} parent=5 // pred_check_branch
        %219 = sbr.rel (%p217) target = $region36
      $region35: #{tpu_custom_call.1} parent=5 // pred_region
        // Predicated region
        $region37: #{tpu_custom_call.1} parent=35 // pred_check
          %p220 = pneg %p39
        $region38: #{tpu_custom_call.1} parent=35 // pred_check_branch
          %222 = sbr.rel (%p220) target = $region40
        $region39: #{tpu_custom_call.1} parent=35 // pred_region
          %s223 = sand.u32 %s29, 1
          %s224 = scalar_lea.sflag [#allocation3], %s223
          %s225 = sand.u32 %s29, 1
          %s226 = smul.addr %s225, 32
          %s227 = scalar_lea.vmem [#allocation2], %s226
          %s228 = smul.u32 4, %s19
          %s230 = ssub.s32 512, 512
          %231 = vsyncadd %s224, %s230
          %s232 = smul.addr %s228, 128
          %s233 = scalar_lea.hbm %s0, %s232
          %s235 = sshll.u32 %s227, 4
          %s236 = int_to_ptr.vmem [resolvable:$true] %s235
          %238 = dma.hbm_to_vmem [thread:$0]  %s233, 512, %s236, %s224
        $region40: #{tpu_custom_call.1} parent=35 // pred_fallthru
          _
      $region36: #{tpu_custom_call.1} parent=5 // pred_fallthru
        _
      %p239 = scmp.le.s32.totalorder 1, %s19
      %p240 = scmp.lt.s32.totalorder %s19, 3
      %p241 = pnand %p239, %p240
      %p242 = pneg %p241
      // Predicated region
      $region41: #{tpu_custom_call.1} parent=5 // pred_check
        _
      $region42: #{tpu_custom_call.1} parent=5 // pred_check_branch
        %244 = sbr.rel (%p241) target = $region44
      $region43: #{tpu_custom_call.1} parent=5 // pred_region
        %s245 = ssub.s32 %s19, 1
        %s246 = sand.u32 %s32, 1
        %s247 = scalar_lea.sflag [#allocation3], %s246
        %s248 = sand.u32 %s32, 1
        %s249 = smul.addr %s248, 32
        %s250 = scalar_lea.vmem [#allocation2], %s249
        // Predicated region
        $region45: #{tpu_custom_call.1} parent=43 // pred_check
          %p251 = pneg %p45
        $region46: #{tpu_custom_call.1} parent=43 // pred_check_branch
          %253 = sbr.rel (%p251) target = $region48
        $region47: #{tpu_custom_call.1} parent=43 // pred_region
          %254 = dma.done %s247, 512
        $region48: #{tpu_custom_call.1} parent=43 // pred_fallthru
          _
        // Predicated region
        $region49: #{tpu_custom_call.1} parent=43 // pred_check
          %p255 = pneg %p108
        $region50: #{tpu_custom_call.1} parent=43 // pred_check_branch
          %257 = sbr.rel (%p255) target = $region52
        $region51: #{tpu_custom_call.1} parent=43 // pred_region
          %258 = dma.done [#allocation6], 4096
        $region52: #{tpu_custom_call.1} parent=43 // pred_fallthru
          _
        %s259 = sand.u32 %s32, 1
        %s260 = scalar_lea.sflag [#allocation3], %s259
        %s261 = sand.u32 %s32, 1
        %s262 = smul.addr %s261, 32
        %s263 = scalar_lea.vmem [#allocation2], %s262
        %p264 = pneg %p45
        %p265 = pneg %p42
        %p266 = pneg %p66
        %p267 = pneg %p63
        %p268 = pneg %p87
        %p269 = pneg %p84
        %p270 = pneg %p108
        %p271 = pneg %p105
        %p272 = pneg %p129
        %p273 = pneg %p126
        %p274 = pneg %p150
        %p275 = pneg %p147
        %p276 = pneg %p176
        %p277 = pneg %p173
        %s278 = sand.u32 %s163, 1
        %s279 = scalar_lea.sflag [#allocation4], %s278
        %s280 = sand.u32 %s163, 1
        %s281 = smul.addr %s280, 8
        %s282 = scalar_lea.vmem [#allocation7], %s281
        %s283 = smul.u32 4, %s24
        %v285 = vld [vmem:[%s250] sm:$0xff]
        %v286 = vld [vmem:[%s250 + $0x8] sm:$0xff]
        %v287 = vld [vmem:[%s250 + $0x10] sm:$0xff]
        %v288 = vld [vmem:[%s250 + $0x18] sm:$0xff]
        %v289 = vld [vmem:[%s1] sm:$0xf]
        %v290 = vld [vmem:[%s2] sm:$0xf]
        %v291 = vld [vmem:[#allocation5] sm:$0xf]
        %v292 = vld [vmem:[#allocation5 + $0x4] sm:$0xf]
        %v293 = vld [vmem:[#allocation5 + $0x8] sm:$0xf]
        %v294 = vld [vmem:[#allocation5 + $0xc] sm:$0xf]
        %v295 = vld [vmem:[#allocation5 + $0x10] sm:$0xf]
        %v296 = vld [vmem:[#allocation5 + $0x14] sm:$0xf]
        %v297 = vld [vmem:[#allocation5 + $0x18] sm:$0xf]
        %v298 = vld [vmem:[#allocation5 + $0x1c] sm:$0xf]
        %v299 = vld [vmem:[#allocation5 + $0x20] sm:$0xf]
        %v300 = vld [vmem:[#allocation5 + $0x24] sm:$0xf]
        %v301 = vld [vmem:[#allocation5 + $0x28] sm:$0xf]
        %v302 = vld [vmem:[#allocation5 + $0x2c] sm:$0xf]
        %v303 = vld [vmem:[#allocation5 + $0x30] sm:$0xf]
        %v304 = vld [vmem:[#allocation5 + $0x34] sm:$0xf]
        %v305 = vld [vmem:[#allocation5 + $0x38] sm:$0xf]
        %v306 = vld [vmem:[#allocation5 + $0x3c] sm:$0xf]
        %v307 = vld [vmem:[#allocation5 + $0x40] sm:$0xf]
        %v308 = vld [vmem:[#allocation5 + $0x44] sm:$0xf]
        %v309 = vld [vmem:[#allocation5 + $0x48] sm:$0xf]
        %v310 = vld [vmem:[#allocation5 + $0x4c] sm:$0xf]
        %v311 = vld [vmem:[#allocation5 + $0x50] sm:$0xf]
        %v312 = vld [vmem:[#allocation5 + $0x54] sm:$0xf]
        %v313 = vld [vmem:[#allocation5 + $0x58] sm:$0xf]
        %v314 = vld [vmem:[#allocation5 + $0x5c] sm:$0xf]
        %v315 = vld [vmem:[#allocation5 + $0x60] sm:$0xf]
        %v316 = vld [vmem:[#allocation5 + $0x64] sm:$0xf]
        %v317 = vld [vmem:[#allocation5 + $0x68] sm:$0xf]
        %v318 = vld [vmem:[#allocation5 + $0x6c] sm:$0xf]
        %v319 = vld [vmem:[#allocation5 + $0x70] sm:$0xf]
        %v320 = vld [vmem:[#allocation5 + $0x74] sm:$0xf]
        %v321 = vld [vmem:[#allocation5 + $0x78] sm:$0xf]
        %v322 = vld [vmem:[#allocation5 + $0x7c] sm:$0xf]
        %v323 = vld [vmem:[#allocation5 + $0x80] sm:$0xf]
        %v324 = vld [vmem:[#allocation5 + $0x84] sm:$0xf]
        %v325 = vld [vmem:[#allocation5 + $0x88] sm:$0xf]
        %v326 = vld [vmem:[#allocation5 + $0x8c] sm:$0xf]
        %v327 = vld [vmem:[#allocation5 + $0x90] sm:$0xf]
        %v328 = vld [vmem:[#allocation5 + $0x94] sm:$0xf]
        %v329 = vld [vmem:[#allocation5 + $0x98] sm:$0xf]
        %v330 = vld [vmem:[#allocation5 + $0x9c] sm:$0xf]
        %v331 = vld [vmem:[#allocation5 + $0xa0] sm:$0xf]
        %v332 = vld [vmem:[#allocation5 + $0xa4] sm:$0xf]
        %v333 = vld [vmem:[#allocation5 + $0xa8] sm:$0xf]
        %v334 = vld [vmem:[#allocation5 + $0xac] sm:$0xf]
        %v335 = vld [vmem:[#allocation5 + $0xb0] sm:$0xf]
        %v336 = vld [vmem:[#allocation5 + $0xb4] sm:$0xf]
        %v337 = vld [vmem:[#allocation5 + $0xb8] sm:$0xf]
        %v338 = vld [vmem:[#allocation5 + $0xbc] sm:$0xf]
        %v339 = vld [vmem:[#allocation5 + $0xc0] sm:$0xf]
        %v340 = vld [vmem:[#allocation5 + $0xc4] sm:$0xf]
        %v341 = vld [vmem:[#allocation5 + $0xc8] sm:$0xf]
        %v342 = vld [vmem:[#allocation5 + $0xcc] sm:$0xf]
        %v343 = vld [vmem:[#allocation5 + $0xd0] sm:$0xf]
        %v344 = vld [vmem:[#allocation5 + $0xd4] sm:$0xf]
        %v345 = vld [vmem:[#allocation5 + $0xd8] sm:$0xf]
        %v346 = vld [vmem:[#allocation5 + $0xdc] sm:$0xf]
        %v347 = vld [vmem:[#allocation5 + $0xe0] sm:$0xf]
        %v348 = vld [vmem:[#allocation5 + $0xe4] sm:$0xf]
        %v349 = vld [vmem:[#allocation5 + $0xe8] sm:$0xf]
        %v350 = vld [vmem:[#allocation5 + $0xec] sm:$0xf]
        %v351 = vld [vmem:[#allocation5 + $0xf0] sm:$0xf]
        %v352 = vld [vmem:[#allocation5 + $0xf4] sm:$0xf]
        %v353 = vld [vmem:[#allocation5 + $0xf8] sm:$0xf]
        %v354 = vld [vmem:[#allocation5 + $0xfc] sm:$0xf]
        %356 = vset.pattern.permute.xlu0 0
        %357 = vperm.xlu0 %356, %v289
        %v358 = vpop.permute.xlu0 %357
        %v360 = vlaneseq
        %v361 = vshrl.u32 %v360, 7
        %v362 = vsub.s32 0, %v361
        %v363 = vrot.slane %v285, %v362
        %v364 = vlaneseq
        %v365 = vshrl.u32 %v364, 7
        %v366 = vsub.s32 0, %v365
        %v367 = vrot.slane %v286, %v366
        %v368 = vlaneseq
        %v369 = vshrl.u32 %v368, 7
        %v370 = vsub.s32 0, %v369
        %v371 = vrot.slane %v287, %v370
        %v372 = vlaneseq
        %v373 = vshrl.u32 %v372, 7
        %v374 = vsub.s32 0, %v373
        %v375 = vrot.slane %v288, %v374
        %v376 = vmul.f32 %v358, %v363
        %v377 = vmul.f32 %v358, %v367
        %v378 = vmul.f32 %v358, %v371
        %v379 = vmul.f32 %v358, %v375
        %380 = vset.pattern.permute.xlu0 1
        %381 = vperm.xlu0 %380, %v289
        %v382 = vpop.permute.xlu0 %381
        %v384 = vlaneseq
        %v385 = vshrl.u32 %v384, 7
        %v386 = vsub.s32 1, %v385
        %v387 = vrot.slane %v285, %v386
        %v388 = vlaneseq
        %v389 = vshrl.u32 %v388, 7
        %v390 = vsub.s32 1, %v389
        %v391 = vrot.slane %v286, %v390
        %v392 = vlaneseq
        %v393 = vshrl.u32 %v392, 7
        %v394 = vsub.s32 1, %v393
        %v395 = vrot.slane %v287, %v394
        %v396 = vlaneseq
        %v397 = vshrl.u32 %v396, 7
        %v398 = vsub.s32 1, %v397
        %v399 = vrot.slane %v288, %v398
        %v400 = vmul.f32 %v382, %v387
        %v401 = vmul.f32 %v382, %v391
        %v402 = vmul.f32 %v382, %v395
        %v403 = vmul.f32 %v382, %v399
        %v404 = vadd.f32 %v376, %v400
        %v405 = vadd.f32 %v377, %v401
        %v406 = vadd.f32 %v378, %v402
        %v407 = vadd.f32 %v379, %v403
        %408 = vset.pattern.permute.xlu0 2
        %409 = vperm.xlu0 %408, %v289
        %v410 = vpop.permute.xlu0 %409
        %v412 = vlaneseq
        %v413 = vshrl.u32 %v412, 7
        %v414 = vsub.s32 2, %v413
        %v415 = vrot.slane %v285, %v414
        %v416 = vlaneseq
        %v417 = vshrl.u32 %v416, 7
        %v418 = vsub.s32 2, %v417
        %v419 = vrot.slane %v286, %v418
        %v420 = vlaneseq
        %v421 = vshrl.u32 %v420, 7
        %v422 = vsub.s32 2, %v421
        %v423 = vrot.slane %v287, %v422
        %v424 = vlaneseq
        %v425 = vshrl.u32 %v424, 7
        %v426 = vsub.s32 2, %v425
        %v427 = vrot.slane %v288, %v426
        %v428 = vmul.f32 %v410, %v415
        %v429 = vmul.f32 %v410, %v419
        %v430 = vmul.f32 %v410, %v423
        %v431 = vmul.f32 %v410, %v427
        %v432 = vadd.f32 %v404, %v428
        %v433 = vadd.f32 %v405, %v429
        %v434 = vadd.f32 %v406, %v430
        %v435 = vadd.f32 %v407, %v431
        %436 = vset.pattern.permute.xlu0 3
        %437 = vperm.xlu0 %436, %v289
        %v438 = vpop.permute.xlu0 %437
        %v440 = vlaneseq
        %v441 = vshrl.u32 %v440, 7
        %v442 = vsub.s32 3, %v441
        %v443 = vrot.slane %v285, %v442
        %v444 = vlaneseq
        %v445 = vshrl.u32 %v444, 7
        %v446 = vsub.s32 3, %v445
        %v447 = vrot.slane %v286, %v446
        %v448 = vlaneseq
        %v449 = vshrl.u32 %v448, 7
        %v450 = vsub.s32 3, %v449
        %v451 = vrot.slane %v287, %v450
        %v452 = vlaneseq
        %v453 = vshrl.u32 %v452, 7
        %v454 = vsub.s32 3, %v453
        %v455 = vrot.slane %v288, %v454
        %v456 = vmul.f32 %v438, %v443
        %v457 = vmul.f32 %v438, %v447
        %v458 = vmul.f32 %v438, %v451
        %v459 = vmul.f32 %v438, %v455
        %v460 = vadd.f32 %v432, %v456
        %v461 = vadd.f32 %v433, %v457
        %v462 = vadd.f32 %v434, %v458
        %v463 = vadd.f32 %v435, %v459
        %464 = vset.pattern.permute.xlu0 4
        %465 = vperm.xlu0 %464, %v289
        %v466 = vpop.permute.xlu0 %465
        %v468 = vlaneseq
        %v469 = vshrl.u32 %v468, 7
        %v470 = vsub.s32 4, %v469
        %v471 = vrot.slane %v285, %v470
        %v472 = vlaneseq
        %v473 = vshrl.u32 %v472, 7
        %v474 = vsub.s32 4, %v473
        %v475 = vrot.slane %v286, %v474
        %v476 = vlaneseq
        %v477 = vshrl.u32 %v476, 7
        %v478 = vsub.s32 4, %v477
        %v479 = vrot.slane %v287, %v478
        %v480 = vlaneseq
        %v481 = vshrl.u32 %v480, 7
        %v482 = vsub.s32 4, %v481
        %v483 = vrot.slane %v288, %v482
        %v484 = vmul.f32 %v466, %v471
        %v485 = vmul.f32 %v466, %v475
        %v486 = vmul.f32 %v466, %v479
        %v487 = vmul.f32 %v466, %v483
        %v488 = vadd.f32 %v460, %v484
        %v489 = vadd.f32 %v461, %v485
        %v490 = vadd.f32 %v462, %v486
        %v491 = vadd.f32 %v463, %v487
        %492 = vset.pattern.permute.xlu0 5
        %493 = vperm.xlu0 %492, %v289
        %v494 = vpop.permute.xlu0 %493
        %v496 = vlaneseq
        %v497 = vshrl.u32 %v496, 7
        %v498 = vsub.s32 5, %v497
        %v499 = vrot.slane %v285, %v498
        %v500 = vlaneseq
        %v501 = vshrl.u32 %v500, 7
        %v502 = vsub.s32 5, %v501
        %v503 = vrot.slane %v286, %v502
        %v504 = vlaneseq
        %v505 = vshrl.u32 %v504, 7
        %v506 = vsub.s32 5, %v505
        %v507 = vrot.slane %v287, %v506
        %v508 = vlaneseq
        %v509 = vshrl.u32 %v508, 7
        %v510 = vsub.s32 5, %v509
        %v511 = vrot.slane %v288, %v510
        %v512 = vmul.f32 %v494, %v499
        %v513 = vmul.f32 %v494, %v503
        %v514 = vmul.f32 %v494, %v507
        %v515 = vmul.f32 %v494, %v511
        %v516 = vadd.f32 %v488, %v512
        %v517 = vadd.f32 %v489, %v513
        %v518 = vadd.f32 %v490, %v514
        %v519 = vadd.f32 %v491, %v515
        %520 = vset.pattern.permute.xlu0 6
        %521 = vperm.xlu0 %520, %v289
        %v522 = vpop.permute.xlu0 %521
        %v524 = vlaneseq
        %v525 = vshrl.u32 %v524, 7
        %v526 = vsub.s32 6, %v525
        %v527 = vrot.slane %v285, %v526
        %v528 = vlaneseq
        %v529 = vshrl.u32 %v528, 7
        %v530 = vsub.s32 6, %v529
        %v531 = vrot.slane %v286, %v530
        %v532 = vlaneseq
        %v533 = vshrl.u32 %v532, 7
        %v534 = vsub.s32 6, %v533
        %v535 = vrot.slane %v287, %v534
        %v536 = vlaneseq
        %v537 = vshrl.u32 %v536, 7
        %v538 = vsub.s32 6, %v537
        %v539 = vrot.slane %v288, %v538
        %v540 = vmul.f32 %v522, %v527
        %v541 = vmul.f32 %v522, %v531
        %v542 = vmul.f32 %v522, %v535
        %v543 = vmul.f32 %v522, %v539
        %v544 = vadd.f32 %v516, %v540
        %v545 = vadd.f32 %v517, %v541
        %v546 = vadd.f32 %v518, %v542
        %v547 = vadd.f32 %v519, %v543
        %548 = vset.pattern.permute.xlu0 7
        %549 = vperm.xlu0 %548, %v289
        %v550 = vpop.permute.xlu0 %549
        %v552 = vlaneseq
        %v553 = vshrl.u32 %v552, 7
        %v554 = vsub.s32 7, %v553
        %v555 = vrot.slane %v285, %v554
        %v556 = vlaneseq
        %v557 = vshrl.u32 %v556, 7
        %v558 = vsub.s32 7, %v557
        %v559 = vrot.slane %v286, %v558
        %v560 = vlaneseq
        %v561 = vshrl.u32 %v560, 7
        %v562 = vsub.s32 7, %v561
        %v563 = vrot.slane %v287, %v562
        %v564 = vlaneseq
        %v565 = vshrl.u32 %v564, 7
        %v566 = vsub.s32 7, %v565
        %v567 = vrot.slane %v288, %v566
        %v568 = vmul.f32 %v550, %v555
        %v569 = vmul.f32 %v550, %v559
        %v570 = vmul.f32 %v550, %v563
        %v571 = vmul.f32 %v550, %v567
        %v572 = vadd.f32 %v544, %v568
        %v573 = vadd.f32 %v545, %v569
        %v574 = vadd.f32 %v546, %v570
        %v575 = vadd.f32 %v547, %v571
        %v576 = vpack.c.bf16 %v572, %v572
        %v577 = vpack.c.bf16 %v573, %v573
        %v578 = vpack.c.bf16 %v574, %v574
        %v579 = vpack.c.bf16 %v575, %v575
        %581 = vset.pattern.permute.xlu0 0
        %582 = vperm.xlu0 %581, %v290
        %v583 = vpop.permute.xlu0 %582
        %v649 = vunpack.c.l.b16 %v291
        %v650 = vunpack.c.l.b16 %v292
        %v651 = vunpack.c.l.b16 %v293
        %v652 = vunpack.c.l.b16 %v294
        %v653 = vunpack.c.l.b16 %v295
        %v654 = vunpack.c.l.b16 %v296
        %v655 = vunpack.c.l.b16 %v297
        %v656 = vunpack.c.l.b16 %v298
        %v657 = vunpack.c.l.b16 %v299
        %v658 = vunpack.c.l.b16 %v300
        %v659 = vunpack.c.l.b16 %v301
        %v660 = vunpack.c.l.b16 %v302
        %v661 = vunpack.c.l.b16 %v303
        %v662 = vunpack.c.l.b16 %v304
        %v663 = vunpack.c.l.b16 %v305
        %v664 = vunpack.c.l.b16 %v306
        %v665 = vunpack.c.l.b16 %v307
        %v666 = vunpack.c.l.b16 %v308
        %v667 = vunpack.c.l.b16 %v309
        %v668 = vunpack.c.l.b16 %v310
        %v669 = vunpack.c.l.b16 %v311
        %v670 = vunpack.c.l.b16 %v312
        %v671 = vunpack.c.l.b16 %v313
        %v672 = vunpack.c.l.b16 %v314
        %v673 = vunpack.c.l.b16 %v315
        %v674 = vunpack.c.l.b16 %v316
        %v675 = vunpack.c.l.b16 %v317
        %v676 = vunpack.c.l.b16 %v318
        %v677 = vunpack.c.l.b16 %v319
        %v678 = vunpack.c.l.b16 %v320
        %v679 = vunpack.c.l.b16 %v321
        %v680 = vunpack.c.l.b16 %v322
        %v681 = vunpack.c.l.b16 %v323
        %v682 = vunpack.c.l.b16 %v324
        %v683 = vunpack.c.l.b16 %v325
        %v684 = vunpack.c.l.b16 %v326
        %v685 = vunpack.c.l.b16 %v327
        %v686 = vunpack.c.l.b16 %v328
        %v687 = vunpack.c.l.b16 %v329
        %v688 = vunpack.c.l.b16 %v330
        %v689 = vunpack.c.l.b16 %v331
        %v690 = vunpack.c.l.b16 %v332
        %v691 = vunpack.c.l.b16 %v333
        %v692 = vunpack.c.l.b16 %v334
        %v693 = vunpack.c.l.b16 %v335
        %v694 = vunpack.c.l.b16 %v336
        %v695 = vunpack.c.l.b16 %v337
        %v696 = vunpack.c.l.b16 %v338
        %v697 = vunpack.c.l.b16 %v339
        %v698 = vunpack.c.l.b16 %v340
        %v699 = vunpack.c.l.b16 %v341
        %v700 = vunpack.c.l.b16 %v342
        %v701 = vunpack.c.l.b16 %v343
        %v702 = vunpack.c.l.b16 %v344
        %v703 = vunpack.c.l.b16 %v345
        %v704 = vunpack.c.l.b16 %v346
        %v705 = vunpack.c.l.b16 %v347
        %v706 = vunpack.c.l.b16 %v348
        %v707 = vunpack.c.l.b16 %v349
        %v708 = vunpack.c.l.b16 %v350
        %v709 = vunpack.c.l.b16 %v351
        %v710 = vunpack.c.l.b16 %v352
        %v711 = vunpack.c.l.b16 %v353
        %v712 = vunpack.c.l.b16 %v354
        %v713 = vpack.c.b16 %v650, %v649
        %v714 = vpack.c.b16 %v652, %v651
        %v715 = vpack.c.b16 %v654, %v653
        %v716 = vpack.c.b16 %v656, %v655
        %v717 = vpack.c.b16 %v658, %v657
        %v718 = vpack.c.b16 %v660, %v659
        %v719 = vpack.c.b16 %v662, %v661
        %v720 = vpack.c.b16 %v664, %v663
        %v721 = vpack.c.b16 %v666, %v665
        %v722 = vpack.c.b16 %v668, %v667
        %v723 = vpack.c.b16 %v670, %v669
        %v724 = vpack.c.b16 %v672, %v671
        %v725 = vpack.c.b16 %v674, %v673
        %v726 = vpack.c.b16 %v676, %v675
        %v727 = vpack.c.b16 %v678, %v677
        %v728 = vpack.c.b16 %v680, %v679
        %v729 = vpack.c.b16 %v682, %v681
        %v730 = vpack.c.b16 %v684, %v683
        %v731 = vpack.c.b16 %v686, %v685
        %v732 = vpack.c.b16 %v688, %v687
        %v733 = vpack.c.b16 %v690, %v689
        %v734 = vpack.c.b16 %v692, %v691
        %v735 = vpack.c.b16 %v694, %v693
        %v736 = vpack.c.b16 %v696, %v695
        %v737 = vpack.c.b16 %v698, %v697
        %v738 = vpack.c.b16 %v700, %v699
        %v739 = vpack.c.b16 %v702, %v701
        %v740 = vpack.c.b16 %v704, %v703
        %v741 = vpack.c.b16 %v706, %v705
        %v742 = vpack.c.b16 %v708, %v707
        %v743 = vpack.c.b16 %v710, %v709
        %v744 = vpack.c.b16 %v712, %v711
        %777 = vmatprep.subr.bf16.mxu0 0
        %778 = vmatpush1.bf16.msra.mxu0 %v713
        %779 = vmatprep.subr.bf16.mxu0 0
        %780 = vmatpush1.bf16.msra.mxu0 %v714
        %781 = vmatprep.subr.bf16.mxu0 0
        %782 = vmatpush1.bf16.msra.mxu0 %v715
        %783 = vmatprep.subr.bf16.mxu0 0
        %784 = vmatpush1.bf16.msra.mxu0 %v716
        %785 = vmatprep.subr.bf16.mxu0 0
        %786 = vmatpush1.bf16.msra.mxu0 %v717
        %787 = vmatprep.subr.bf16.mxu0 0
        %788 = vmatpush1.bf16.msra.mxu0 %v718
        %789 = vmatprep.subr.bf16.mxu0 0
        %790 = vmatpush1.bf16.msra.mxu0 %v719
        %791 = vmatprep.subr.bf16.mxu0 0
        %792 = vmatpush1.bf16.msra.mxu0 %v720
        %793 = vmatprep.subr.bf16.mxu0 0
        %794 = vmatpush1.bf16.msra.mxu0 %v721
        %795 = vmatprep.subr.bf16.mxu0 0
        %796 = vmatpush1.bf16.msra.mxu0 %v722
        %797 = vmatprep.subr.bf16.mxu0 0
        %798 = vmatpush1.bf16.msra.mxu0 %v723
        %799 = vmatprep.subr.bf16.mxu0 0
        %800 = vmatpush1.bf16.msra.mxu0 %v724
        %801 = vmatprep.subr.bf16.mxu0 0
        %802 = vmatpush1.bf16.msra.mxu0 %v725
        %803 = vmatprep.subr.bf16.mxu0 0
        %804 = vmatpush1.bf16.msra.mxu0 %v726
        %805 = vmatprep.subr.bf16.mxu0 0
        %806 = vmatpush1.bf16.msra.mxu0 %v727
        %807 = vmatprep.subr.bf16.mxu0 0
        %808 = vmatpush1.bf16.msra.mxu0 %v728
        %809 = vmatprep.mubr.bf16.mxu0 %v577
        %810 = vmatmul.mubr.bf16.gmra.mrb[0].mxu0 %v576
        %v811 = vpop.f32.mrb[0].mxu0
        %v812 = vadd.f32 %v583, %v811
        %v813 = vpop.f32.mrb[0].mxu0
        %v814 = vpop.f32.mrb[0].mxu0
        %v815 = vpop.f32.mrb[0].mxu0
        %816 = vdwg.mxu0
        %817 = vmatprep.subr.bf16.mxu0 0
        %818 = vmatpush1.bf16.msra.mxu0 %v729
        %819 = vmatprep.subr.bf16.mxu0 0
        %820 = vmatpush1.bf16.msra.mxu0 %v730
        %821 = vmatprep.subr.bf16.mxu0 0
        %822 = vmatpush1.bf16.msra.mxu0 %v731
        %823 = vmatprep.subr.bf16.mxu0 0
        %824 = vmatpush1.bf16.msra.mxu0 %v732
        %825 = vmatprep.subr.bf16.mxu0 0
        %826 = vmatpush1.bf16.msra.mxu0 %v733
        %827 = vmatprep.subr.bf16.mxu0 0
        %828 = vmatpush1.bf16.msra.mxu0 %v734
        %829 = vmatprep.subr.bf16.mxu0 0
        %830 = vmatpush1.bf16.msra.mxu0 %v735
        %831 = vmatprep.subr.bf16.mxu0 0
        %832 = vmatpush1.bf16.msra.mxu0 %v736
        %833 = vmatprep.subr.bf16.mxu0 0
        %834 = vmatpush1.bf16.msra.mxu0 %v737
        %835 = vmatprep.subr.bf16.mxu0 0
        %836 = vmatpush1.bf16.msra.mxu0 %v738
        %837 = vmatprep.subr.bf16.mxu0 0
        %838 = vmatpush1.bf16.msra.mxu0 %v739
        %839 = vmatprep.subr.bf16.mxu0 0
        %840 = vmatpush1.bf16.msra.mxu0 %v740
        %841 = vmatprep.subr.bf16.mxu0 0
        %842 = vmatpush1.bf16.msra.mxu0 %v741
        %843 = vmatprep.subr.bf16.mxu0 0
        %844 = vmatpush1.bf16.msra.mxu0 %v742
        %845 = vmatprep.subr.bf16.mxu0 0
        %846 = vmatpush1.bf16.msra.mxu0 %v743
        %847 = vmatprep.subr.bf16.mxu0 0
        %848 = vmatpush1.bf16.msra.mxu0 %v744
        %849 = vmatprep.mubr.bf16.mxu0 %v579
        %850 = vmatmul.mubr.bf16.gmra.mrb[0].mxu0 %v578
        %v851 = vpop.f32.mrb[0].mxu0
        %v852 = vadd.f32 %v812, %v851
        %v853 = vpop.f32.mrb[0].mxu0
        %v854 = vpop.f32.mrb[0].mxu0
        %v855 = vpop.f32.mrb[0].mxu0
        %856 = vdwg.mxu0
        %v857 = vmax.f32 %v852, 0.0
        %858 = vst [vmem:[%s282] sm:$0xf] %v857
        %v859 = vld [vmem:[%s4] sm:$0x3]
        %v860 = vld [vmem:[%s5] sm:$0x3]
        %862 = vset.pattern.permute.xlu0 0
        %863 = vperm.xlu0 %862, %v859
        %v864 = vpop.permute.xlu0 %863
        %v866 = vlaneseq
        %v867 = vshrl.u32 %v866, 7
        %v868 = vsub.s32 0, %v867
        %v869 = vrot.slane %v857, %v868
        %v870 = vmul.f32 %v864, %v869
        %871 = vset.pattern.permute.xlu0 1
        %872 = vperm.xlu0 %871, %v859
        %v873 = vpop.permute.xlu0 %872
        %v875 = vlaneseq
        %v876 = vshrl.u32 %v875, 7
        %v877 = vsub.s32 1, %v876
        %v878 = vrot.slane %v857, %v877
        %v879 = vmul.f32 %v873, %v878
        %v880 = vadd.f32 %v870, %v879
        %881 = vset.pattern.permute.xlu0 2
        %882 = vperm.xlu0 %881, %v859
        %v883 = vpop.permute.xlu0 %882
        %v885 = vlaneseq
        %v886 = vshrl.u32 %v885, 7
        %v887 = vsub.s32 2, %v886
        %v888 = vrot.slane %v857, %v887
        %v889 = vmul.f32 %v883, %v888
        %v890 = vadd.f32 %v880, %v889
        %891 = vset.pattern.permute.xlu0 3
        %892 = vperm.xlu0 %891, %v859
        %v893 = vpop.permute.xlu0 %892
        %v895 = vlaneseq
        %v896 = vshrl.u32 %v895, 7
        %v897 = vsub.s32 3, %v896
        %v898 = vrot.slane %v857, %v897
        %v899 = vmul.f32 %v893, %v898
        %v900 = vadd.f32 %v890, %v899
        %902 = vset.pattern.permute.xlu0 0
        %903 = vperm.xlu0 %902, %v860
        %v904 = vpop.permute.xlu0 %903
        %v906 = vadd.f32 %v900, %v904
        %v907 = vmax.f32 %v906, 0.0
        %908 = vst [vmem:[%s282 + $0x4] sm:$0x3] %v907
        %s909 = sand.u32 %s163, 1
        %s910 = scalar_lea.sflag [#allocation4], %s909
        %s911 = sand.u32 %s163, 1
        %s912 = smul.addr %s911, 8
        %s913 = scalar_lea.vmem [#allocation7], %s912
        // Predicated region
        $region53: #{tpu_custom_call.1} parent=43 // pred_check
          %p914 = pneg %p173
        $region54: #{tpu_custom_call.1} parent=43 // pred_check_branch
          %916 = sbr.rel (%p914) target = $region56
        $region55: #{tpu_custom_call.1} parent=43 // pred_region
          %s918 = ssub.s32 128, 128
          %919 = vsyncadd %s910, %s918
          %s920 = smul.addr %s24, 128
          %s921 = scalar_lea.hbm %s6, %s920
          %s923 = sshll.u32 %s913, 4
          %s924 = int_to_ptr.vmem [resolvable:$true] %s923
          %926 = dma.vmem_to_hbm [thread:$0]  %s924, 128, %s921, %s910
        $region56: #{tpu_custom_call.1} parent=43 // pred_fallthru
          _
      $region44: #{tpu_custom_call.1} parent=5 // pred_fallthru
        _
      %p927 = scmp.le.s32.totalorder 2, %s19
      // Predicated region
      $region57: #{tpu_custom_call.1} parent=5 // pred_check
        %p928 = pneg %p927
      $region58: #{tpu_custom_call.1} parent=5 // pred_check_branch
        %930 = sbr.rel (%p928) target = $region60
      $region59: #{tpu_custom_call.1} parent=5 // pred_region
        %s931 = ssub.s32 %s19, 2
        // Predicated region
        $region61: #{tpu_custom_call.1} parent=59 // pred_check
          %p932 = pneg %p179
        $region62: #{tpu_custom_call.1} parent=59 // pred_check_branch
          %934 = sbr.rel (%p932) target = $region64
        $region63: #{tpu_custom_call.1} parent=59 // pred_region
          %s935 = sand.u32 %s164, 1
          %s936 = scalar_lea.sflag [#allocation4], %s935
          %s937 = sand.u32 %s164, 1
          %s938 = smul.addr %s937, 8
          %s939 = scalar_lea.vmem [#allocation7], %s938
          %940 = dma.done %s936, 128
        $region64: #{tpu_custom_call.1} parent=59 // pred_fallthru
          _
      $region60: #{tpu_custom_call.1} parent=5 // pred_fallthru
        _
    $region6: #{tpu_custom_call.1} parent=1 // loop_footer
      %s23 = sadd.s32 1, %s19
    $region7: #{tpu_custom_call.1} parent=1 // loop_footer_branch
      %18 = sbr.rel target = $region3
    $region8: #{tpu_custom_call.1} parent=1 // loop_exit
      _
    %941 = vsyncpa [#allocation3], 1
    %s942 = scalar_lea.sflag [#allocation3], 1
    %943 = vsyncpa %s942, 1
    %944 = vsyncpa [#allocation6], 1
    %945 = vsyncpa [#allocation4], 1
    %s946 = scalar_lea.sflag [#allocation4], 1
    %947 = vsyncpa %s946, 1

</llo_original>
